<compile_context>
chip_gen: v7x
topology: tpu7x:2x2x1
jax: 0.10.0
libtpu: 0.0.40
codegen_flags: <defaults>
</compile_context>

<pallas_src>
import functools

import jax
import jax.numpy as jnp
from jax import lax
from jax.experimental import pallas as pl
from jax.experimental.pallas import tpu as pltpu


# ---------------------------------------------------------------------------
# Kernel 1: merged-head QKV projection with resident weights.
# grid = (B, N//tn); q is pre-scaled by head_dim**-0.5.
# ---------------------------------------------------------------------------
def qkv_proj_kernel(x_ref, wq_ref, wk_ref, wv_ref, bq_ref, bk_ref, bv_ref,
                    q_ref, k_ref, v_ref, *, scale, num_heads, head_dim):
    x = x_ref[0]                                                    # (tn, C)
    q = (jnp.dot(x, wq_ref[...], preferred_element_type=jnp.float32)
         + bq_ref[...]) * scale                                     # (tn, C)
    k = jnp.dot(x, wk_ref[...], preferred_element_type=jnp.float32) + bk_ref[...]
    v = jnp.dot(x, wv_ref[...], preferred_element_type=jnp.float32) + bv_ref[...]
    # Scatter per-head column slabs into head-major (B, H, N, hd) outputs.
    # num_heads is a Python int -> static unrolled loop, static lane slices.
    for h in range(num_heads):
        sl = slice(h * head_dim, (h + 1) * head_dim)
        q_ref[0, h] = q[:, sl].astype(q_ref.dtype)
        k_ref[0, h] = k[:, sl].astype(k_ref.dtype)
        v_ref[0, h] = v[:, sl].astype(v_ref.dtype)


# ---------------------------------------------------------------------------
# Kernel 2: flash attention (online softmax) fused with the output projection.
# grid = (B, N//tq, H, N//tkv); heads + kv tiles are sequential reduction
# axes; the output block (b, qi) is resident across them.
# ---------------------------------------------------------------------------
def flash_attn_proj_kernel(q_ref, k_ref, v_ref, wp_ref, bp_ref, o_ref,
                           m_sc, l_sc, acc_sc, out_sc):
    h = pl.program_id(2)
    ki = pl.program_id(3)
    last_h = pl.num_programs(2) - 1
    last_ki = pl.num_programs(3) - 1

    @pl.when((h == 0) & (ki == 0))
    def _():
        out_sc[...] = jnp.zeros_like(out_sc[...])

    @pl.when(ki == 0)
    def _():
        m_sc[...] = jnp.full_like(m_sc[...], -jnp.inf)
        l_sc[...] = jnp.zeros_like(l_sc[...])
        acc_sc[...] = jnp.zeros_like(acc_sc[...])

    q = q_ref[0, 0]                    # (tq, hd) -- already scaled
    k = k_ref[0, 0]                    # (tkv, hd)
    v = v_ref[0, 0]                    # (tkv, hd)

    # s = q @ k^T, contracting over head_dim -- no physical transpose of k.
    s = lax.dot_general(q, k, dimension_numbers=(((1,), (1,)), ((), ())),
                        preferred_element_type=jnp.float32)         # (tq, tkv)

    m_prev = m_sc[...]
    m_new = jnp.maximum(m_prev, jnp.max(s, axis=-1, keepdims=True))
    alpha = jnp.exp(m_prev - m_new)
    p = jnp.exp(s - m_new)                                           # (tq, tkv)
    l_sc[...] = alpha * l_sc[...] + jnp.sum(p, axis=-1, keepdims=True)
    acc_sc[...] = alpha * acc_sc[...] + jnp.dot(
        p.astype(v.dtype), v, preferred_element_type=jnp.float32)
    m_sc[...] = m_new

    # End of this head's KV sweep: normalize (EUP approx reciprocal) and fold
    # directly into the output projection via the resident W_proj slab.
    @pl.when(ki == last_ki)
    def _():
        inv_l = pl.reciprocal(l_sc[...], approx=True)
        o_h = (acc_sc[...] * inv_l).astype(wp_ref.dtype)             # (tq, hd)
        out_sc[...] += jnp.dot(o_h, wp_ref[h],
                               preferred_element_type=jnp.float32)

    @pl.when((h == last_h) & (ki == last_ki))
    def _():
        o_ref[0] = (out_sc[...] + bp_ref[...]).astype(o_ref.dtype)


# ---------------------------------------------------------------------------
# Wrapper
# ---------------------------------------------------------------------------
def _pick_tile(n, target):
    """Largest divisor of n that is <= target and sublane-aligned (mult. of 8).
    Falls back to the full extent (always a legal block) only if none exists.
    TODO(synk): for awkward N, pad to a multiple of 128 in the caller instead."""
    if n <= target:
        return n
    for cand in range(min(target, n), 7, -1):
        if n % cand == 0 and cand % 8 == 0:
            return cand
    return n


def multi_head_attention_3d(x, w_qkv, b_qkv, w_proj, b_proj, num_heads,
                            *, n_tile=256, q_tile=256, kv_tile=1024):
    """x: (B, N, C); w_qkv: (C, 3C); b_qkv: (1, 3C); w_proj: (C, C); b_proj: (1, C).
    Weights are (in_features, out_features), i.e. transposed vs. nn.Linear."""
    B, N, C = x.shape
    H = num_heads
    hd = C // H
    scale = float(hd) ** (-0.5)

    tn = _pick_tile(N, n_tile)
    tq = _pick_tile(N, q_tile)
    tkv = _pick_tile(N, kv_tile)

    # --- host-side parameter plumbing (pure slicing / reshape) -------------
    wq, wk, wv = (w_qkv[:, i * C:(i + 1) * C] for i in range(3))   # (C, C)
    bq, bk, bv = (b_qkv[:, i * C:(i + 1) * C] for i in range(3))   # (1, C)
    wp = w_proj.reshape(H, hd, C)        # per-head row slabs of the projection
    bp = b_proj                          # (1, C)

    # --- Kernel 1: merged-head QKV projection -> (B, H, N, hd) q, k, v ------
    qkv_out = jax.ShapeDtypeStruct((B, H, N, hd), x.dtype)
    q, k, v = pl.pallas_call(
        functools.partial(qkv_proj_kernel, scale=scale, num_heads=H,
                          head_dim=hd),
        out_shape=(qkv_out, qkv_out, qkv_out),
        grid=(B, N // tn),
        in_specs=[
            pl.BlockSpec((1, tn, C), lambda b, i: (b, i, 0)),    # x tile
            pl.BlockSpec((C, C), lambda b, i: (0, 0)),           # Wq (resident)
            pl.BlockSpec((C, C), lambda b, i: (0, 0)),           # Wk (resident)
            pl.BlockSpec((C, C), lambda b, i: (0, 0)),           # Wv (resident)
            pl.BlockSpec((1, C), lambda b, i: (0, 0)),           # bq (resident)
            pl.BlockSpec((1, C), lambda b, i: (0, 0)),           # bk (resident)
            pl.BlockSpec((1, C), lambda b, i: (0, 0)),           # bv (resident)
        ],
        out_specs=(
            pl.BlockSpec((1, H, tn, hd), lambda b, i: (b, 0, i, 0)),
            pl.BlockSpec((1, H, tn, hd), lambda b, i: (b, 0, i, 0)),
            pl.BlockSpec((1, H, tn, hd), lambda b, i: (b, 0, i, 0)),
        ),
        compiler_params=pltpu.CompilerParams(
            dimension_semantics=("parallel", "parallel")),
    )(x, wq, wk, wv, bq, bk, bv)

    # --- Kernel 2: flash attention fused with the output projection ---------
    out = pl.pallas_call(
        flash_attn_proj_kernel,
        out_shape=jax.ShapeDtypeStruct((B, N, C), x.dtype),
        grid=(B, N // tq, H, N // tkv),
        in_specs=[
            pl.BlockSpec((1, 1, tq, hd), lambda b, qi, h, ki: (b, h, qi, 0)),
            pl.BlockSpec((1, 1, tkv, hd), lambda b, qi, h, ki: (b, h, ki, 0)),
            pl.BlockSpec((1, 1, tkv, hd), lambda b, qi, h, ki: (b, h, ki, 0)),
            pl.BlockSpec((H, hd, C), lambda b, qi, h, ki: (0, 0, 0)),  # Wp resident
            pl.BlockSpec((1, C), lambda b, qi, h, ki: (0, 0)),         # bp resident
        ],
        out_specs=pl.BlockSpec((1, tq, C), lambda b, qi, h, ki: (b, qi, 0)),
        scratch_shapes=[
            pltpu.VMEM((tq, 1), jnp.float32),    # running max
            pltpu.VMEM((tq, 1), jnp.float32),    # running sum
            pltpu.VMEM((tq, hd), jnp.float32),   # per-head attention acc
            pltpu.VMEM((tq, C), jnp.float32),    # output-projection acc
        ],
        compiler_params=pltpu.CompilerParams(
            dimension_semantics=("parallel", "parallel", "arbitrary",
                                 "arbitrary")),
    )(q, k, v, wp, bp)
    return out


# ---------------------------------------------------------------------------
# Plain-JAX reference mirroring the PyTorch forward.
# ---------------------------------------------------------------------------
def reference(x, w_qkv, b_qkv, w_proj, b_proj, num_heads):
    B, N, C = x.shape
    head_dim = C // num_heads
    scale = float(head_dim) ** (-0.5)
    qkv = x @ w_qkv + b_qkv[0]                                  # (B, N, 3C)
    qkv = qkv.reshape(B, N, 3, num_heads, head_dim)
    qkv = jnp.transpose(qkv, (2, 0, 3, 1, 4))                   # (3, B, H, N, hd)
    q, k, v = qkv[0], qkv[1], qkv[2]
    attn = jnp.einsum("bhnd,bhmd->bhnm", q, k) * scale
    attn = jax.nn.softmax(attn, axis=-1)
    o = jnp.einsum("bhnm,bhmd->bhnd", attn, v)
    o = jnp.transpose(o, (0, 2, 1, 3)).reshape(B, N, C)
    return o @ w_proj + b_proj[0]


if __name__ == "__main__":
    B, N, C = 2, 8, 32
    num_heads = 4

    key = jax.random.PRNGKey(0)
    kx, kw1, kb1, kw2, kb2 = jax.random.split(key, 5)

    x = jax.random.normal(kx, (B, N, C), dtype=jnp.float32)
    # Parameter shapes per nn.Linear in __init__ (stored (in, out)):
    #   qkv: Linear(dim, dim*3, bias=True)   proj: Linear(dim, dim)
    w_qkv = jax.random.normal(kw1, (C, 3 * C), dtype=jnp.float32) * 0.05
    b_qkv = jax.random.normal(kb1, (1, 3 * C), dtype=jnp.float32) * 0.05
    w_proj = jax.random.normal(kw2, (C, C), dtype=jnp.float32) * 0.05
    b_proj = jax.random.normal(kb2, (1, C), dtype=jnp.float32) * 0.05

    out = multi_head_attention_3d(x, w_qkv, b_qkv, w_proj, b_proj, num_heads)
    out = jax.block_until_ready(out)

    ref = reference(x, w_qkv, b_qkv, w_proj, b_proj, num_heads)
    assert out.shape == (B, N, C)
    # Tolerance covers the EUP approximate reciprocal on the softmax denom.
    err = float(jnp.max(jnp.abs(out - ref)))
    assert jnp.allclose(out, ref, atol=1e-3, rtol=1e-3), err

    print("KERNEL_OK")
</pallas_src>

<mosaic_0001>
module attributes {stable_mosaic.version = 11 : i64} {
  func.func @qkv_proj_kernel(%arg0: i32, %arg1: i32, %arg2: memref<1x8x32xf32, #tpu.memory_space<vmem>>, %arg3: memref<32x32xf32, #tpu.memory_space<vmem>>, %arg4: memref<32x32xf32, #tpu.memory_space<vmem>>, %arg5: memref<32x32xf32, #tpu.memory_space<vmem>>, %arg6: memref<1x32xf32, #tpu.memory_space<vmem>>, %arg7: memref<1x32xf32, #tpu.memory_space<vmem>>, %arg8: memref<1x32xf32, #tpu.memory_space<vmem>>, %arg9: memref<1x4x8x8xf32, #tpu.memory_space<vmem>>, %arg10: memref<1x4x8x8xf32, #tpu.memory_space<vmem>>, %arg11: memref<1x4x8x8xf32, #tpu.memory_space<vmem>>) attributes {dimension_semantics = [#tpu.dimension_semantics<parallel>, #tpu.dimension_semantics<parallel>], iteration_bounds = array<i64: 2, 1>, scalar_prefetch = 0 : i64, scratch_operands = 0 : i64, tpu.core_type = #tpu.core_type<tc>, window_params = [{transform_indices = @transform_0, window_bounds = array<i64: 1, 8, 32>}, {pipeline_mode = #tpu.pipeline_mode<synchronous>, transform_indices = @transform_1, window_bounds = array<i64: 32, 32>}, {pipeline_mode = #tpu.pipeline_mode<synchronous>, transform_indices = @transform_2, window_bounds = array<i64: 32, 32>}, {pipeline_mode = #tpu.pipeline_mode<synchronous>, transform_indices = @transform_3, window_bounds = array<i64: 32, 32>}, {pipeline_mode = #tpu.pipeline_mode<synchronous>, transform_indices = @transform_4, window_bounds = array<i64: 1, 32>}, {pipeline_mode = #tpu.pipeline_mode<synchronous>, transform_indices = @transform_5, window_bounds = array<i64: 1, 32>}, {pipeline_mode = #tpu.pipeline_mode<synchronous>, transform_indices = @transform_6, window_bounds = array<i64: 1, 32>}, {transform_indices = @transform_7, window_bounds = array<i64: 1, 4, 8, 8>}, {transform_indices = @transform_8, window_bounds = array<i64: 1, 4, 8, 8>}, {transform_indices = @transform_9, window_bounds = array<i64: 1, 4, 8, 8>}]} {
    %c0 = arith.constant 0 : index
    %c0_0 = arith.constant 0 : index
    %c0_1 = arith.constant 0 : index
    %0 = vector.load %arg2[%c0, %c0_0, %c0_1] : memref<1x8x32xf32, #tpu.memory_space<vmem>>, vector<1x8x32xf32>
    %1 = vector.shape_cast %0 : vector<1x8x32xf32> to vector<8x32xf32>
    %c0_2 = arith.constant 0 : index
    %c0_3 = arith.constant 0 : index
    %2 = vector.load %arg3[%c0_2, %c0_3] : memref<32x32xf32, #tpu.memory_space<vmem>>, vector<32x32xf32>
    %cst = arith.constant dense<0.000000e+00> : vector<8x32xf32>
    %3 = tpu.matmul %1, %2, %cst {dimension_numbers = #tpu.dot_dimension_numbers<[1], [0], [0], [1], [0, 0, 1, 1], [], []>} : vector<8x32xf32>, vector<32x32xf32>, vector<8x32xf32> -> vector<8x32xf32>
    %c0_4 = arith.constant 0 : index
    %c0_5 = arith.constant 0 : index
    %4 = vector.load %arg6[%c0_4, %c0_5] : memref<1x32xf32, #tpu.memory_space<vmem>>, vector<1x32xf32>
    %5 = vector.broadcast %4 : vector<1x32xf32> to vector<8x32xf32>
    %6 = arith.addf %3, %5 : vector<8x32xf32>
    %cst_6 = arith.constant 0.353553385 : f32
    %7 = vector.broadcast %cst_6 : f32 to vector<8x32xf32>
    %8 = arith.mulf %6, %7 : vector<8x32xf32>
    %c0_7 = arith.constant 0 : index
    %c0_8 = arith.constant 0 : index
    %9 = vector.load %arg4[%c0_7, %c0_8] : memref<32x32xf32, #tpu.memory_space<vmem>>, vector<32x32xf32>
    %cst_9 = arith.constant dense<0.000000e+00> : vector<8x32xf32>
    %10 = tpu.matmul %1, %9, %cst_9 {dimension_numbers = #tpu.dot_dimension_numbers<[1], [0], [0], [1], [0, 0, 1, 1], [], []>} : vector<8x32xf32>, vector<32x32xf32>, vector<8x32xf32> -> vector<8x32xf32>
    %c0_10 = arith.constant 0 : index
    %c0_11 = arith.constant 0 : index
    %11 = vector.load %arg7[%c0_10, %c0_11] : memref<1x32xf32, #tpu.memory_space<vmem>>, vector<1x32xf32>
    %12 = vector.broadcast %11 : vector<1x32xf32> to vector<8x32xf32>
    %13 = arith.addf %10, %12 : vector<8x32xf32>
    %c0_12 = arith.constant 0 : index
    %c0_13 = arith.constant 0 : index
    %14 = vector.load %arg5[%c0_12, %c0_13] : memref<32x32xf32, #tpu.memory_space<vmem>>, vector<32x32xf32>
    %cst_14 = arith.constant dense<0.000000e+00> : vector<8x32xf32>
    %15 = tpu.matmul %1, %14, %cst_14 {dimension_numbers = #tpu.dot_dimension_numbers<[1], [0], [0], [1], [0, 0, 1, 1], [], []>} : vector<8x32xf32>, vector<32x32xf32>, vector<8x32xf32> -> vector<8x32xf32>
    %c0_15 = arith.constant 0 : index
    %c0_16 = arith.constant 0 : index
    %16 = vector.load %arg8[%c0_15, %c0_16] : memref<1x32xf32, #tpu.memory_space<vmem>>, vector<1x32xf32>
    %17 = vector.broadcast %16 : vector<1x32xf32> to vector<8x32xf32>
    %18 = arith.addf %15, %17 : vector<8x32xf32>
    %19 = vector.extract_strided_slice %8 {offsets = [0, 0], sizes = [8, 8], strides = [1, 1]} : vector<8x32xf32> to vector<8x8xf32>
    %c0_17 = arith.constant 0 : index
    %c0_18 = arith.constant 0 : index
    %c0_19 = arith.constant 0 : index
    %c0_20 = arith.constant 0 : index
    %20 = vector.load %arg9[%c0_17, %c0_18, %c0_19, %c0_20] : memref<1x4x8x8xf32, #tpu.memory_space<vmem>>, vector<1x1x8x8xf32>
    %21 = vector.shape_cast %20 : vector<1x1x8x8xf32> to vector<8x8xf32>
    %22 = vector.shape_cast %19 : vector<8x8xf32> to vector<1x1x8x8xf32>
    tpu.vector_store %arg9[%c0_17, %c0_18, %c0_19, %c0_20], %22 {strides = array<i32>} : memref<1x4x8x8xf32, #tpu.memory_space<vmem>>, vector<1x1x8x8xf32>,
    %23 = vector.extract_strided_slice %13 {offsets = [0, 0], sizes = [8, 8], strides = [1, 1]} : vector<8x32xf32> to vector<8x8xf32>
    %c0_21 = arith.constant 0 : index
    %c0_22 = arith.constant 0 : index
    %c0_23 = arith.constant 0 : index
    %c0_24 = arith.constant 0 : index
    %24 = vector.load %arg10[%c0_21, %c0_22, %c0_23, %c0_24] : memref<1x4x8x8xf32, #tpu.memory_space<vmem>>, vector<1x1x8x8xf32>
    %25 = vector.shape_cast %24 : vector<1x1x8x8xf32> to vector<8x8xf32>
    %26 = vector.shape_cast %23 : vector<8x8xf32> to vector<1x1x8x8xf32>
    tpu.vector_store %arg10[%c0_21, %c0_22, %c0_23, %c0_24], %26 {strides = array<i32>} : memref<1x4x8x8xf32, #tpu.memory_space<vmem>>, vector<1x1x8x8xf32>,
    %27 = vector.extract_strided_slice %18 {offsets = [0, 0], sizes = [8, 8], strides = [1, 1]} : vector<8x32xf32> to vector<8x8xf32>
    %c0_25 = arith.constant 0 : index
    %c0_26 = arith.constant 0 : index
    %c0_27 = arith.constant 0 : index
    %c0_28 = arith.constant 0 : index
    %28 = vector.load %arg11[%c0_25, %c0_26, %c0_27, %c0_28] : memref<1x4x8x8xf32, #tpu.memory_space<vmem>>, vector<1x1x8x8xf32>
    %29 = vector.shape_cast %28 : vector<1x1x8x8xf32> to vector<8x8xf32>
    %30 = vector.shape_cast %27 : vector<8x8xf32> to vector<1x1x8x8xf32>
    tpu.vector_store %arg11[%c0_25, %c0_26, %c0_27, %c0_28], %30 {strides = array<i32>} : memref<1x4x8x8xf32, #tpu.memory_space<vmem>>, vector<1x1x8x8xf32>,
    %31 = vector.extract_strided_slice %8 {offsets = [0, 8], sizes = [8, 8], strides = [1, 1]} : vector<8x32xf32> to vector<8x8xf32>
    %c0_29 = arith.constant 0 : index
    %c1 = arith.constant 1 : index
    %c0_30 = arith.constant 0 : index
    %c0_31 = arith.constant 0 : index
    %32 = vector.load %arg9[%c0_29, %c1, %c0_30, %c0_31] : memref<1x4x8x8xf32, #tpu.memory_space<vmem>>, vector<1x1x8x8xf32>
    %33 = vector.shape_cast %32 : vector<1x1x8x8xf32> to vector<8x8xf32>
    %34 = vector.shape_cast %31 : vector<8x8xf32> to vector<1x1x8x8xf32>
    tpu.vector_store %arg9[%c0_29, %c1, %c0_30, %c0_31], %34 {strides = array<i32>} : memref<1x4x8x8xf32, #tpu.memory_space<vmem>>, vector<1x1x8x8xf32>,
    %35 = vector.extract_strided_slice %13 {offsets = [0, 8], sizes = [8, 8], strides = [1, 1]} : vector<8x32xf32> to vector<8x8xf32>
    %c0_32 = arith.constant 0 : index
    %c1_33 = arith.constant 1 : index
    %c0_34 = arith.constant 0 : index
    %c0_35 = arith.constant 0 : index
    %36 = vector.load %arg10[%c0_32, %c1_33, %c0_34, %c0_35] : memref<1x4x8x8xf32, #tpu.memory_space<vmem>>, vector<1x1x8x8xf32>
    %37 = vector.shape_cast %36 : vector<1x1x8x8xf32> to vector<8x8xf32>
    %38 = vector.shape_cast %35 : vector<8x8xf32> to vector<1x1x8x8xf32>
    tpu.vector_store %arg10[%c0_32, %c1_33, %c0_34, %c0_35], %38 {strides = array<i32>} : memref<1x4x8x8xf32, #tpu.memory_space<vmem>>, vector<1x1x8x8xf32>,
    %39 = vector.extract_strided_slice %18 {offsets = [0, 8], sizes = [8, 8], strides = [1, 1]} : vector<8x32xf32> to vector<8x8xf32>
    %c0_36 = arith.constant 0 : index
    %c1_37 = arith.constant 1 : index
    %c0_38 = arith.constant 0 : index
    %c0_39 = arith.constant 0 : index
    %40 = vector.load %arg11[%c0_36, %c1_37, %c0_38, %c0_39] : memref<1x4x8x8xf32, #tpu.memory_space<vmem>>, vector<1x1x8x8xf32>
    %41 = vector.shape_cast %40 : vector<1x1x8x8xf32> to vector<8x8xf32>
    %42 = vector.shape_cast %39 : vector<8x8xf32> to vector<1x1x8x8xf32>
    tpu.vector_store %arg11[%c0_36, %c1_37, %c0_38, %c0_39], %42 {strides = array<i32>} : memref<1x4x8x8xf32, #tpu.memory_space<vmem>>, vector<1x1x8x8xf32>,
    %43 = vector.extract_strided_slice %8 {offsets = [0, 16], sizes = [8, 8], strides = [1, 1]} : vector<8x32xf32> to vector<8x8xf32>
    %c0_40 = arith.constant 0 : index
    %c2 = arith.constant 2 : index
    %c0_41 = arith.constant 0 : index
    %c0_42 = arith.constant 0 : index
    %44 = vector.load %arg9[%c0_40, %c2, %c0_41, %c0_42] : memref<1x4x8x8xf32, #tpu.memory_space<vmem>>, vector<1x1x8x8xf32>
    %45 = vector.shape_cast %44 : vector<1x1x8x8xf32> to vector<8x8xf32>
    %46 = vector.shape_cast %43 : vector<8x8xf32> to vector<1x1x8x8xf32>
    tpu.vector_store %arg9[%c0_40, %c2, %c0_41, %c0_42], %46 {strides = array<i32>} : memref<1x4x8x8xf32, #tpu.memory_space<vmem>>, vector<1x1x8x8xf32>,
    %47 = vector.extract_strided_slice %13 {offsets = [0, 16], sizes = [8, 8], strides = [1, 1]} : vector<8x32xf32> to vector<8x8xf32>
    %c0_43 = arith.constant 0 : index
    %c2_44 = arith.constant 2 : index
    %c0_45 = arith.constant 0 : index
    %c0_46 = arith.constant 0 : index
    %48 = vector.load %arg10[%c0_43, %c2_44, %c0_45, %c0_46] : memref<1x4x8x8xf32, #tpu.memory_space<vmem>>, vector<1x1x8x8xf32>
    %49 = vector.shape_cast %48 : vector<1x1x8x8xf32> to vector<8x8xf32>
    %50 = vector.shape_cast %47 : vector<8x8xf32> to vector<1x1x8x8xf32>
    tpu.vector_store %arg10[%c0_43, %c2_44, %c0_45, %c0_46], %50 {strides = array<i32>} : memref<1x4x8x8xf32, #tpu.memory_space<vmem>>, vector<1x1x8x8xf32>,
    %51 = vector.extract_strided_slice %18 {offsets = [0, 16], sizes = [8, 8], strides = [1, 1]} : vector<8x32xf32> to vector<8x8xf32>
    %c0_47 = arith.constant 0 : index
    %c2_48 = arith.constant 2 : index
    %c0_49 = arith.constant 0 : index
    %c0_50 = arith.constant 0 : index
    %52 = vector.load %arg11[%c0_47, %c2_48, %c0_49, %c0_50] : memref<1x4x8x8xf32, #tpu.memory_space<vmem>>, vector<1x1x8x8xf32>
    %53 = vector.shape_cast %52 : vector<1x1x8x8xf32> to vector<8x8xf32>
    %54 = vector.shape_cast %51 : vector<8x8xf32> to vector<1x1x8x8xf32>
    tpu.vector_store %arg11[%c0_47, %c2_48, %c0_49, %c0_50], %54 {strides = array<i32>} : memref<1x4x8x8xf32, #tpu.memory_space<vmem>>, vector<1x1x8x8xf32>,
    %55 = vector.extract_strided_slice %8 {offsets = [0, 24], sizes = [8, 8], strides = [1, 1]} : vector<8x32xf32> to vector<8x8xf32>
    %c0_51 = arith.constant 0 : index
    %c3 = arith.constant 3 : index
    %c0_52 = arith.constant 0 : index
    %c0_53 = arith.constant 0 : index
    %56 = vector.load %arg9[%c0_51, %c3, %c0_52, %c0_53] : memref<1x4x8x8xf32, #tpu.memory_space<vmem>>, vector<1x1x8x8xf32>
    %57 = vector.shape_cast %56 : vector<1x1x8x8xf32> to vector<8x8xf32>
    %58 = vector.shape_cast %55 : vector<8x8xf32> to vector<1x1x8x8xf32>
    tpu.vector_store %arg9[%c0_51, %c3, %c0_52, %c0_53], %58 {strides = array<i32>} : memref<1x4x8x8xf32, #tpu.memory_space<vmem>>, vector<1x1x8x8xf32>,
    %59 = vector.extract_strided_slice %13 {offsets = [0, 24], sizes = [8, 8], strides = [1, 1]} : vector<8x32xf32> to vector<8x8xf32>
    %c0_54 = arith.constant 0 : index
    %c3_55 = arith.constant 3 : index
    %c0_56 = arith.constant 0 : index
    %c0_57 = arith.constant 0 : index
    %60 = vector.load %arg10[%c0_54, %c3_55, %c0_56, %c0_57] : memref<1x4x8x8xf32, #tpu.memory_space<vmem>>, vector<1x1x8x8xf32>
    %61 = vector.shape_cast %60 : vector<1x1x8x8xf32> to vector<8x8xf32>
    %62 = vector.shape_cast %59 : vector<8x8xf32> to vector<1x1x8x8xf32>
    tpu.vector_store %arg10[%c0_54, %c3_55, %c0_56, %c0_57], %62 {strides = array<i32>} : memref<1x4x8x8xf32, #tpu.memory_space<vmem>>, vector<1x1x8x8xf32>,
    %63 = vector.extract_strided_slice %18 {offsets = [0, 24], sizes = [8, 8], strides = [1, 1]} : vector<8x32xf32> to vector<8x8xf32>
    %c0_58 = arith.constant 0 : index
    %c3_59 = arith.constant 3 : index
    %c0_60 = arith.constant 0 : index
    %c0_61 = arith.constant 0 : index
    %64 = vector.load %arg11[%c0_58, %c3_59, %c0_60, %c0_61] : memref<1x4x8x8xf32, #tpu.memory_space<vmem>>, vector<1x1x8x8xf32>
    %65 = vector.shape_cast %64 : vector<1x1x8x8xf32> to vector<8x8xf32>
    %66 = vector.shape_cast %63 : vector<8x8xf32> to vector<1x1x8x8xf32>
    tpu.vector_store %arg11[%c0_58, %c3_59, %c0_60, %c0_61], %66 {strides = array<i32>} : memref<1x4x8x8xf32, #tpu.memory_space<vmem>>, vector<1x1x8x8xf32>,
    return
  }
  func.func @transform_0(%arg0: i32, %arg1: i32) -> (i32, i32, i32) {
    %c0_i32 = arith.constant 0 : i32
    %c0_i32_0 = arith.constant 0 : i32
    return %arg0, %arg1, %c0_i32 : i32, i32, i32
  }
  func.func @transform_1(%arg0: i32, %arg1: i32) -> (i32, i32) {
    %c0_i32 = arith.constant 0 : i32
    %c0_i32_0 = arith.constant 0 : i32
    %c0_i32_1 = arith.constant 0 : i32
    return %c0_i32, %c0_i32_0 : i32, i32
  }
  func.func @transform_2(%arg0: i32, %arg1: i32) -> (i32, i32) {
    %c0_i32 = arith.constant 0 : i32
    %c0_i32_0 = arith.constant 0 : i32
    %c0_i32_1 = arith.constant 0 : i32
    return %c0_i32, %c0_i32_0 : i32, i32
  }
  func.func @transform_3(%arg0: i32, %arg1: i32) -> (i32, i32) {
    %c0_i32 = arith.constant 0 : i32
    %c0_i32_0 = arith.constant 0 : i32
    %c0_i32_1 = arith.constant 0 : i32
    return %c0_i32, %c0_i32_0 : i32, i32
  }
  func.func @transform_4(%arg0: i32, %arg1: i32) -> (i32, i32) {
    %c0_i32 = arith.constant 0 : i32
    %c0_i32_0 = arith.constant 0 : i32
    %c0_i32_1 = arith.constant 0 : i32
    return %c0_i32, %c0_i32_0 : i32, i32
  }
  func.func @transform_5(%arg0: i32, %arg1: i32) -> (i32, i32) {
    %c0_i32 = arith.constant 0 : i32
    %c0_i32_0 = arith.constant 0 : i32
    %c0_i32_1 = arith.constant 0 : i32
    return %c0_i32, %c0_i32_0 : i32, i32
  }
  func.func @transform_6(%arg0: i32, %arg1: i32) -> (i32, i32) {
    %c0_i32 = arith.constant 0 : i32
    %c0_i32_0 = arith.constant 0 : i32
    %c0_i32_1 = arith.constant 0 : i32
    return %c0_i32, %c0_i32_0 : i32, i32
  }
  func.func @transform_7(%arg0: i32, %arg1: i32) -> (i32, i32, i32, i32) {
    %c0_i32 = arith.constant 0 : i32
    %c0_i32_0 = arith.constant 0 : i32
    %c0_i32_1 = arith.constant 0 : i32
    return %arg0, %c0_i32, %arg1, %c0_i32_0 : i32, i32, i32, i32
  }
  func.func @transform_8(%arg0: i32, %arg1: i32) -> (i32, i32, i32, i32) {
    %c0_i32 = arith.constant 0 : i32
    %c0_i32_0 = arith.constant 0 : i32
    %c0_i32_1 = arith.constant 0 : i32
    return %arg0, %c0_i32, %arg1, %c0_i32_0 : i32, i32, i32, i32
  }
  func.func @transform_9(%arg0: i32, %arg1: i32) -> (i32, i32, i32, i32) {
    %c0_i32 = arith.constant 0 : i32
    %c0_i32_0 = arith.constant 0 : i32
    %c0_i32_1 = arith.constant 0 : i32
    return %arg0, %c0_i32, %arg1, %c0_i32_0 : i32, i32, i32, i32
  }
}

</mosaic_0001>

<llo_original>
// kernel: tpu_custom_call.1
$region0: #{tpu_custom_call.1}
  #allocation0 [shape = 'u32[]', space=smem, size = 0x4, offset = 0x4, fixed_abs, tag = 'smem constant byte address 0x4 - core index']
  #allocation1 [shape = 'u32[144,128]{1,0:T(1,128)}', space=vmem, size = 0x12000, scoped, tag = 'internal scratch']
  %s0 = inlined_call_operand.hbm [shape: f32[2,8,32], index: 0, kind: input, shape index: {}]
  %s1 = inlined_call_operand.hbm [shape: f32[32,32], index: 1, kind: input, shape index: {}]
  %s2 = inlined_call_operand.hbm [shape: f32[32,32], index: 2, kind: input, shape index: {}]
  %s3 = inlined_call_operand.hbm [shape: f32[32,32], index: 3, kind: input, shape index: {}]
  %s4 = inlined_call_operand.vmem [shape: f32[1,32], index: 4, kind: input, shape index: {}]
  %s5 = inlined_call_operand.vmem [shape: f32[1,32], index: 5, kind: input, shape index: {}]
  %s6 = inlined_call_operand.vmem [shape: f32[1,32], index: 6, kind: input, shape index: {}]
  %s7 = inlined_call_operand.hbm [shape: f32[2,4,8,8], index: 7, kind: output, shape index: {0}]
  %s8 = inlined_call_operand.hbm [shape: f32[2,4,8,8], index: 8, kind: output, shape index: {1}]
  %s9 = inlined_call_operand.hbm [shape: f32[2,4,8,8], index: 9, kind: output, shape index: {2}]
  %10 = xla_tuple %s7, %s8, %s9
  %s11 = sld [smem:[#allocation0]]
  $region93: #{tpu_custom_call.1} parent=0
    _
  %s13 = ssub.s32 1, %s11
  %s14 = scalar_select 0, %s13, %s11
  $region1: #{tpu_custom_call.1} parent=0
    #allocation2 [shape = 'u8[8192]{0}', space=vmem, size = 0x2000, scoped, tag = 'input window, operand 0']
    #allocation3 [shape = 's32[2]{0}', space=sflag, size = 0x8, scoped, tag = 'scoped memory for tpu_custom_call.1']
    #allocation4 [shape = 's32[2]{0}', space=sflag, size = 0x8, scoped, tag = 'scoped memory for tpu_custom_call.1']
    #allocation5 [shape = 'u8[16384]{0}', space=vmem, size = 0x4000, scoped, tag = 'input window, operand 1, single buffered']
    #allocation6 [shape = 's32[1]{0}', space=sflag, size = 0x4, scoped, tag = 'scoped memory for tpu_custom_call.1']
    #allocation7 [shape = 'u8[16384]{0}', space=vmem, size = 0x4000, scoped, tag = 'input window, operand 2, single buffered']
    #allocation8 [shape = 'u8[16384]{0}', space=vmem, size = 0x4000, scoped, tag = 'input window, operand 3, single buffered']
    #allocation9 [shape = 's32[1]{0}', space=sflag, size = 0x4, scoped, tag = 'scoped memory for tpu_custom_call.1']
    #allocation10 [shape = 'u8[32768]{0}', space=vmem, size = 0x8000, scoped, tag = 'output window, operand 0']
    #allocation11 [shape = 'u8[32768]{0}', space=vmem, size = 0x8000, scoped, tag = 'output window, operand 1']
    #allocation12 [shape = 's32[2]{0}', space=sflag, size = 0x8, scoped, tag = 'scoped memory for tpu_custom_call.1']
    #allocation13 [shape = 'u8[32768]{0}', space=vmem, size = 0x8000, scoped, tag = 'output window, operand 2']
    %15 = vsyncpa [#allocation3], 0
    %s16 = scalar_lea.sflag [#allocation3], 1
    %17 = vsyncpa %s16, 0
    %18 = vsyncpa [#allocation6], 0
    %19 = vsyncpa [#allocation9], 0
    %20 = vsyncpa [#allocation4], 0
    %s21 = scalar_lea.sflag [#allocation4], 1
    %22 = vsyncpa %s21, 0
    %23 = vsyncpa [#allocation12], 0
    %s24 = scalar_lea.sflag [#allocation12], 1
    %25 = vsyncpa %s24, 0
    loop: start=0, step=1, limit=4
    $region2: #{tpu_custom_call.1} parent=1 // loop_pre_header
      _
    $region3: #{tpu_custom_call.1} parent=1 // loop_header
      %s27 = sphi 0, %s31
      %p28 = scmp.ge.s32.totalorder %s27, 4
      %s34 = sphi 0, %s46
      %s35 = sphi 0, %s42
      %s36 = sphi 0, %s34
      %s37 = sphi 0, %s35
      %s38 = sphi 0, %s36
      %s39 = sphi 0, %s37
      %s51 = sphi 0, %s53
      %s54 = sphi 0, %s51
      %s55 = sphi 0, %s54
      %s71 = sphi 0, %s55
      %s75 = sphi 0, %s75
      %s77 = sphi 0, %s75
      %s78 = sphi 0, %s77
      %s92 = sphi 0, %s78
      %s96 = sphi 0, %s96
      %s98 = sphi 0, %s96
      %s99 = sphi 0, %s98
      %s113 = sphi 0, %s99
      %s117 = sphi 0, %s117
      %s119 = sphi 0, %s117
      %s120 = sphi 0, %s119
      %s134 = sphi 0, %s120
      %s138 = sphi 0, %s138
      %s140 = sphi 0, %s138
      %s141 = sphi 0, %s140
      %s155 = sphi 0, %s141
      %s159 = sphi 0, %s159
      %s161 = sphi 0, %s159
      %s162 = sphi 0, %s161
      %s176 = sphi 0, %s162
      %s180 = sphi 0, %s180
      %s182 = sphi 0, %s180
      %s183 = sphi 0, %s182
      %s197 = sphi 0, %s183
      %s205 = sphi 0, %s207
      %s208 = sphi 0, %s205
      %s209 = sphi 0, %s208
      %s225 = sphi 0, %s209
      %s233 = sphi 0, %s235
      %s236 = sphi 0, %s233
      %s237 = sphi 0, %s236
      %s253 = sphi 0, %s237
      %s261 = sphi 0, %s263
      %s264 = sphi 0, %s261
      %s265 = sphi 0, %s264
      %s281 = sphi 0, %s265
    $region4: #{tpu_custom_call.1} parent=1 // loop_header_branch
      %30 = sbr.rel (%p28) target = $region8
    $region5: #{tpu_custom_call.1} parent=1 // loop_body
      %s32 = ssub.s32 %s27, 1
      %s33 = ssub.s32 %s27, 2
      %s40 = sadd.s32 1, %s35
      %p41 = scmp.ge.s32.totalorder %s40, 1
      %s42 = scalar_select %p41, 0, %s40
      %s43 = sadd.s32 1, %s34
      %s44 = scalar_select %p41, %s43, %s34
      %p45 = scmp.ge.s32.totalorder %s44, 2
      %s46 = scalar_select %p45, 0, %s44
      %s47 = ssub.s32 %s34, %s46
      %s48 = ssub.s32 %s35, %s42
      %s49 = sor.u32 %s47, %s48
      %p50 = scmp.eq.s32.totalorder %s49, 0
      %s52 = sadd.s32 %s51, 1
      %s53 = scalar_select %p50, %s51, %s52
      %p56 = pneg %p50
      %p57 = scmp.eq.s32.totalorder %s27, 1
      %p58 = por %p56, %p57
      %p59 = scmp.ne.s32.totalorder %s51, %s54
      %p60 = scmp.eq.s32.totalorder %s27, 0
      %p61 = por %p59, %p60
      %p62 = scmp.ne.s32.totalorder %s51, %s54
      %p63 = scmp.eq.s32.totalorder %s32, 1
      %p64 = por %p62, %p63
      %p65 = scmp.ne.s32.totalorder %s54, %s55
      %p66 = scmp.eq.s32.totalorder %s32, 0
      %p67 = por %p65, %p66
      %p68 = scmp.ne.s32.totalorder %s54, %s55
      %p69 = scmp.eq.s32.totalorder %s33, 1
      %p70 = por %p68, %p69
      %p72 = scmp.ne.s32.totalorder %s55, %s71
      %p73 = scmp.eq.s32.totalorder %s33, 0
      %p74 = por %p72, %p73
      %s76 = sadd.s32 %s75, 1
      %p79 = scmp.eq.s32.totalorder %s27, 1
      %p80 = scmp.ne.s32.totalorder %s75, %s77
      %p81 = scmp.eq.s32.totalorder %s27, 0
      %p82 = por %p80, %p81
      %p83 = scmp.ne.s32.totalorder %s75, %s77
      %p84 = scmp.eq.s32.totalorder %s32, 1
      %p85 = por %p83, %p84
      %p86 = scmp.ne.s32.totalorder %s77, %s78
      %p87 = scmp.eq.s32.totalorder %s32, 0
      %p88 = por %p86, %p87
      %p89 = scmp.ne.s32.totalorder %s77, %s78
      %p90 = scmp.eq.s32.totalorder %s33, 1
      %p91 = por %p89, %p90
      %p93 = scmp.ne.s32.totalorder %s78, %s92
      %p94 = scmp.eq.s32.totalorder %s33, 0
      %p95 = por %p93, %p94
      %s97 = sadd.s32 %s96, 1
      %p100 = scmp.eq.s32.totalorder %s27, 1
      %p101 = scmp.ne.s32.totalorder %s96, %s98
      %p102 = scmp.eq.s32.totalorder %s27, 0
      %p103 = por %p101, %p102
      %p104 = scmp.ne.s32.totalorder %s96, %s98
      %p105 = scmp.eq.s32.totalorder %s32, 1
      %p106 = por %p104, %p105
      %p107 = scmp.ne.s32.totalorder %s98, %s99
      %p108 = scmp.eq.s32.totalorder %s32, 0
      %p109 = por %p107, %p108
      %p110 = scmp.ne.s32.totalorder %s98, %s99
      %p111 = scmp.eq.s32.totalorder %s33, 1
      %p112 = por %p110, %p111
      %p114 = scmp.ne.s32.totalorder %s99, %s113
      %p115 = scmp.eq.s32.totalorder %s33, 0
      %p116 = por %p114, %p115
      %s118 = sadd.s32 %s117, 1
      %p121 = scmp.eq.s32.totalorder %s27, 1
      %p122 = scmp.ne.s32.totalorder %s117, %s119
      %p123 = scmp.eq.s32.totalorder %s27, 0
      %p124 = por %p122, %p123
      %p125 = scmp.ne.s32.totalorder %s117, %s119
      %p126 = scmp.eq.s32.totalorder %s32, 1
      %p127 = por %p125, %p126
      %p128 = scmp.ne.s32.totalorder %s119, %s120
      %p129 = scmp.eq.s32.totalorder %s32, 0
      %p130 = por %p128, %p129
      %p131 = scmp.ne.s32.totalorder %s119, %s120
      %p132 = scmp.eq.s32.totalorder %s33, 1
      %p133 = por %p131, %p132
      %p135 = scmp.ne.s32.totalorder %s120, %s134
      %p136 = scmp.eq.s32.totalorder %s33, 0
      %p137 = por %p135, %p136
      %s139 = sadd.s32 %s138, 1
      %p142 = scmp.eq.s32.totalorder %s27, 1
      %p143 = scmp.ne.s32.totalorder %s138, %s140
      %p144 = scmp.eq.s32.totalorder %s27, 0
      %p145 = por %p143, %p144
      %p146 = scmp.ne.s32.totalorder %s138, %s140
      %p147 = scmp.eq.s32.totalorder %s32, 1
      %p148 = por %p146, %p147
      %p149 = scmp.ne.s32.totalorder %s140, %s141
      %p150 = scmp.eq.s32.totalorder %s32, 0
      %p151 = por %p149, %p150
      %p152 = scmp.ne.s32.totalorder %s140, %s141
      %p153 = scmp.eq.s32.totalorder %s33, 1
      %p154 = por %p152, %p153
      %p156 = scmp.ne.s32.totalorder %s141, %s155
      %p157 = scmp.eq.s32.totalorder %s33, 0
      %p158 = por %p156, %p157
      %s160 = sadd.s32 %s159, 1
      %p163 = scmp.eq.s32.totalorder %s27, 1
      %p164 = scmp.ne.s32.totalorder %s159, %s161
      %p165 = scmp.eq.s32.totalorder %s27, 0
      %p166 = por %p164, %p165
      %p167 = scmp.ne.s32.totalorder %s159, %s161
      %p168 = scmp.eq.s32.totalorder %s32, 1
      %p169 = por %p167, %p168
      %p170 = scmp.ne.s32.totalorder %s161, %s162
      %p171 = scmp.eq.s32.totalorder %s32, 0
      %p172 = por %p170, %p171
      %p173 = scmp.ne.s32.totalorder %s161, %s162
      %p174 = scmp.eq.s32.totalorder %s33, 1
      %p175 = por %p173, %p174
      %p177 = scmp.ne.s32.totalorder %s162, %s176
      %p178 = scmp.eq.s32.totalorder %s33, 0
      %p179 = por %p177, %p178
      %s181 = sadd.s32 %s180, 1
      %p184 = scmp.eq.s32.totalorder %s27, 1
      %p185 = scmp.ne.s32.totalorder %s180, %s182
      %p186 = scmp.eq.s32.totalorder %s27, 0
      %p187 = por %p185, %p186
      %p188 = scmp.ne.s32.totalorder %s180, %s182
      %p189 = scmp.eq.s32.totalorder %s32, 1
      %p190 = por %p188, %p189
      %p191 = scmp.ne.s32.totalorder %s182, %s183
      %p192 = scmp.eq.s32.totalorder %s32, 0
      %p193 = por %p191, %p192
      %p194 = scmp.ne.s32.totalorder %s182, %s183
      %p195 = scmp.eq.s32.totalorder %s33, 1
      %p196 = por %p194, %p195
      %p198 = scmp.ne.s32.totalorder %s183, %s197
      %p199 = scmp.eq.s32.totalorder %s33, 0
      %p200 = por %p198, %p199
      %s201 = ssub.s32 %s34, %s46
      %s202 = ssub.s32 %s35, %s42
      %s203 = sor.u32 %s201, %s202
      %p204 = scmp.eq.s32.totalorder %s203, 0
      %s206 = sadd.s32 %s205, 1
      %s207 = scalar_select %p204, %s205, %s206
      %p210 = pneg %p204
      %p211 = scmp.eq.s32.totalorder %s27, 1
      %p212 = por %p210, %p211
      %p213 = scmp.ne.s32.totalorder %s205, %s208
      %p214 = scmp.eq.s32.totalorder %s27, 0
      %p215 = por %p213, %p214
      %p216 = scmp.ne.s32.totalorder %s205, %s208
      %p217 = scmp.eq.s32.totalorder %s32, 1
      %p218 = por %p216, %p217
      %p219 = scmp.ne.s32.totalorder %s208, %s209
      %p220 = scmp.eq.s32.totalorder %s32, 0
      %p221 = por %p219, %p220
      %p222 = scmp.ne.s32.totalorder %s208, %s209
      %p223 = scmp.eq.s32.totalorder %s33, 1
      %p224 = por %p222, %p223
      %p226 = scmp.ne.s32.totalorder %s209, %s225
      %p227 = scmp.eq.s32.totalorder %s33, 0
      %p228 = por %p226, %p227
      %s229 = ssub.s32 %s34, %s46
      %s230 = ssub.s32 %s35, %s42
      %s231 = sor.u32 %s229, %s230
      %p232 = scmp.eq.s32.totalorder %s231, 0
      %s234 = sadd.s32 %s233, 1
      %s235 = scalar_select %p232, %s233, %s234
      %p238 = pneg %p232
      %p239 = scmp.eq.s32.totalorder %s27, 1
      %p240 = por %p238, %p239
      %p241 = scmp.ne.s32.totalorder %s233, %s236
      %p242 = scmp.eq.s32.totalorder %s27, 0
      %p243 = por %p241, %p242
      %p244 = scmp.ne.s32.totalorder %s233, %s236
      %p245 = scmp.eq.s32.totalorder %s32, 1
      %p246 = por %p244, %p245
      %p247 = scmp.ne.s32.totalorder %s236, %s237
      %p248 = scmp.eq.s32.totalorder %s32, 0
      %p249 = por %p247, %p248
      %p250 = scmp.ne.s32.totalorder %s236, %s237
      %p251 = scmp.eq.s32.totalorder %s33, 1
      %p252 = por %p250, %p251
      %p254 = scmp.ne.s32.totalorder %s237, %s253
      %p255 = scmp.eq.s32.totalorder %s33, 0
      %p256 = por %p254, %p255
      %s257 = ssub.s32 %s34, %s46
      %s258 = ssub.s32 %s35, %s42
      %s259 = sor.u32 %s257, %s258
      %p260 = scmp.eq.s32.totalorder %s259, 0
      %s262 = sadd.s32 %s261, 1
      %s263 = scalar_select %p260, %s261, %s262
      %p266 = pneg %p260
      %p267 = scmp.eq.s32.totalorder %s27, 1
      %p268 = por %p266, %p267
      %p269 = scmp.ne.s32.totalorder %s261, %s264
      %p270 = scmp.eq.s32.totalorder %s27, 0
      %p271 = por %p269, %p270
      %p272 = scmp.ne.s32.totalorder %s261, %s264
      %p273 = scmp.eq.s32.totalorder %s32, 1
      %p274 = por %p272, %p273
      %p275 = scmp.ne.s32.totalorder %s264, %s265
      %p276 = scmp.eq.s32.totalorder %s32, 0
      %p277 = por %p275, %p276
      %p278 = scmp.ne.s32.totalorder %s264, %s265
      %p279 = scmp.eq.s32.totalorder %s33, 1
      %p280 = por %p278, %p279
      %p282 = scmp.ne.s32.totalorder %s265, %s281
      %p283 = scmp.eq.s32.totalorder %s33, 0
      %p284 = por %p282, %p283
      %p285 = scmp.le.s32.totalorder 1, %s27
      %p286 = scmp.lt.s32.totalorder %s27, 3
      %p287 = pnand %p285, %p286
      %p288 = pneg %p287
      // Predicated region
      $region9: #{tpu_custom_call.1} parent=5 // pred_check
        _
      $region10: #{tpu_custom_call.1} parent=5 // pred_check_branch
        %290 = sbr.rel (%p287) target = $region12
      $region11: #{tpu_custom_call.1} parent=5 // pred_region
        %s291 = ssub.s32 %s27, 1
        // Predicated region
        $region13: #{tpu_custom_call.1} parent=11 // pred_check
          %p292 = pneg %p88
        $region14: #{tpu_custom_call.1} parent=11 // pred_check_branch
          %294 = sbr.rel (%p292) target = $region16
        $region15: #{tpu_custom_call.1} parent=11 // pred_region
          %s296 = ssub.s32 512, 512
          %297 = vsyncadd [#allocation6], %s296
          %s298 = sshll.u32 [#allocation5], 4
          %s299 = int_to_ptr.vmem [resolvable:$true] %s298
          %304 = dma.hbm_to_vmem [thread:$0]  %s1, 512, %s299, [#allocation6], 128, 128, 8
        $region16: #{tpu_custom_call.1} parent=11 // pred_fallthru
          _
        // Predicated region
        $region17: #{tpu_custom_call.1} parent=11 // pred_check
          %p305 = pneg %p109
        $region18: #{tpu_custom_call.1} parent=11 // pred_check_branch
          %307 = sbr.rel (%p305) target = $region20
        $region19: #{tpu_custom_call.1} parent=11 // pred_region
          %s309 = ssub.s32 512, 512
          %310 = vsyncadd [#allocation6], %s309
          %s311 = sshll.u32 [#allocation7], 4
          %s312 = int_to_ptr.vmem [resolvable:$true] %s311
          %317 = dma.hbm_to_vmem [thread:$0]  %s2, 512, %s312, [#allocation6], 128, 128, 8
        $region20: #{tpu_custom_call.1} parent=11 // pred_fallthru
          _
        // Predicated region
        $region21: #{tpu_custom_call.1} parent=11 // pred_check
          %p318 = pneg %p130
        $region22: #{tpu_custom_call.1} parent=11 // pred_check_branch
          %320 = sbr.rel (%p318) target = $region24
        $region23: #{tpu_custom_call.1} parent=11 // pred_region
          %s322 = ssub.s32 512, 512
          %323 = vsyncadd [#allocation9], %s322
          %s324 = sshll.u32 [#allocation8], 4
          %s325 = int_to_ptr.vmem [resolvable:$true] %s324
          %330 = dma.hbm_to_vmem [thread:$0]  %s3, 512, %s325, [#allocation9], 128, 128, 8
        $region24: #{tpu_custom_call.1} parent=11 // pred_fallthru
          _
        // Predicated region
        $region25: #{tpu_custom_call.1} parent=11 // pred_check
          %p331 = pneg %p151
        $region26: #{tpu_custom_call.1} parent=11 // pred_check_branch
          %333 = sbr.rel (%p331) target = $region28
        $region27: #{tpu_custom_call.1} parent=11 // pred_region
          _
        $region28: #{tpu_custom_call.1} parent=11 // pred_fallthru
          _
        // Predicated region
        $region29: #{tpu_custom_call.1} parent=11 // pred_check
          %p334 = pneg %p172
        $region30: #{tpu_custom_call.1} parent=11 // pred_check_branch
          %336 = sbr.rel (%p334) target = $region32
        $region31: #{tpu_custom_call.1} parent=11 // pred_region
          _
        $region32: #{tpu_custom_call.1} parent=11 // pred_fallthru
          _
        // Predicated region
        $region33: #{tpu_custom_call.1} parent=11 // pred_check
          %p337 = pneg %p193
        $region34: #{tpu_custom_call.1} parent=11 // pred_check_branch
          %339 = sbr.rel (%p337) target = $region36
        $region35: #{tpu_custom_call.1} parent=11 // pred_region
          _
        $region36: #{tpu_custom_call.1} parent=11 // pred_fallthru
          _
      $region12: #{tpu_custom_call.1} parent=5 // pred_fallthru
        _
      %p340 = scmp.lt.s32.totalorder %s27, 2
      // Predicated region
      $region37: #{tpu_custom_call.1} parent=5 // pred_check
        %p341 = pneg %p340
      $region38: #{tpu_custom_call.1} parent=5 // pred_check_branch
        %343 = sbr.rel (%p341) target = $region40
      $region39: #{tpu_custom_call.1} parent=5 // pred_region
        // Predicated region
        $region41: #{tpu_custom_call.1} parent=39 // pred_check
          %p344 = pneg %p61
        $region42: #{tpu_custom_call.1} parent=39 // pred_check_branch
          %346 = sbr.rel (%p344) target = $region44
        $region43: #{tpu_custom_call.1} parent=39 // pred_region
          %s347 = sand.u32 %s51, 1
          %s348 = scalar_lea.sflag [#allocation3], %s347
          %s349 = sand.u32 %s51, 1
          %s350 = smul.addr %s349, 8
          %s351 = scalar_lea.vmem [#allocation2], %s350
          %s353 = ssub.s32 128, 128
          %354 = vsyncadd %s348, %s353
          %s355 = sadd.s32 %s35, %s34
          %s356 = smul.addr %s355, 128
          %s357 = scalar_lea.hbm %s0, %s356
          %s359 = sshll.u32 %s351, 4
          %s360 = int_to_ptr.vmem [resolvable:$true] %s359
          %362 = dma.hbm_to_vmem [thread:$0]  %s357, 128, %s360, %s348
        $region44: #{tpu_custom_call.1} parent=39 // pred_fallthru
          _
      $region40: #{tpu_custom_call.1} parent=5 // pred_fallthru
        _
      %p363 = scmp.le.s32.totalorder 1, %s27
      %p364 = scmp.lt.s32.totalorder %s27, 3
      %p365 = pnand %p363, %p364
      %p366 = pneg %p365
      // Predicated region
      $region45: #{tpu_custom_call.1} parent=5 // pred_check
        _
      $region46: #{tpu_custom_call.1} parent=5 // pred_check_branch
        %368 = sbr.rel (%p365) target = $region48
      $region47: #{tpu_custom_call.1} parent=5 // pred_region
        %s369 = ssub.s32 %s27, 1
        %s370 = sand.u32 %s54, 1
        %s371 = scalar_lea.sflag [#allocation3], %s370
        %s372 = sand.u32 %s54, 1
        %s373 = smul.addr %s372, 8
        %s374 = scalar_lea.vmem [#allocation2], %s373
        // Predicated region
        $region49: #{tpu_custom_call.1} parent=47 // pred_check
          %p375 = pneg %p67
        $region50: #{tpu_custom_call.1} parent=47 // pred_check_branch
          %377 = sbr.rel (%p375) target = $region52
        $region51: #{tpu_custom_call.1} parent=47 // pred_region
          %378 = dma.done %s371, 128
        $region52: #{tpu_custom_call.1} parent=47 // pred_fallthru
          _
        // Predicated region
        $region53: #{tpu_custom_call.1} parent=47 // pred_check
          %p379 = pneg %p88
        $region54: #{tpu_custom_call.1} parent=47 // pred_check_branch
          %381 = sbr.rel (%p379) target = $region56
        $region55: #{tpu_custom_call.1} parent=47 // pred_region
          %382 = dma.done [#allocation6], 512
        $region56: #{tpu_custom_call.1} parent=47 // pred_fallthru
          _
        // Predicated region
        $region57: #{tpu_custom_call.1} parent=47 // pred_check
          %p383 = pneg %p109
        $region58: #{tpu_custom_call.1} parent=47 // pred_check_branch
          %385 = sbr.rel (%p383) target = $region60
        $region59: #{tpu_custom_call.1} parent=47 // pred_region
          %386 = dma.done [#allocation6], 512
        $region60: #{tpu_custom_call.1} parent=47 // pred_fallthru
          _
        // Predicated region
        $region61: #{tpu_custom_call.1} parent=47 // pred_check
          %p387 = pneg %p130
        $region62: #{tpu_custom_call.1} parent=47 // pred_check_branch
          %389 = sbr.rel (%p387) target = $region64
        $region63: #{tpu_custom_call.1} parent=47 // pred_region
          %390 = dma.done [#allocation9], 512
        $region64: #{tpu_custom_call.1} parent=47 // pred_fallthru
          _
        %s391 = sand.u32 %s54, 1
        %s392 = scalar_lea.sflag [#allocation3], %s391
        %s393 = sand.u32 %s54, 1
        %s394 = smul.addr %s393, 8
        %s395 = scalar_lea.vmem [#allocation2], %s394
        %p396 = pneg %p67
        %p397 = pneg %p64
        %p398 = pneg %p88
        %p399 = pneg %p85
        %p400 = pneg %p109
        %p401 = pneg %p106
        %p402 = pneg %p130
        %p403 = pneg %p127
        %p404 = pneg %p151
        %p405 = pneg %p148
        %p406 = pneg %p172
        %p407 = pneg %p169
        %p408 = pneg %p193
        %p409 = pneg %p190
        %p410 = pneg %p221
        %p411 = pneg %p218
        %s412 = sand.u32 %s208, 1
        %s413 = scalar_lea.sflag [#allocation4], %s412
        %s414 = sand.u32 %s208, 1
        %s415 = smul.addr %s414, 32
        %s416 = scalar_lea.vmem [#allocation10], %s415
        %p417 = pneg %p249
        %p418 = pneg %p246
        %s419 = sand.u32 %s32, 1
        %s420 = scalar_lea.sflag [#allocation12], %s419
        %s421 = sand.u32 %s236, 1
        %s422 = smul.addr %s421, 32
        %s423 = scalar_lea.vmem [#allocation11], %s422
        %p424 = pneg %p277
        %p425 = pneg %p274
        %s426 = sand.u32 %s32, 1
        %s427 = scalar_lea.sflag [#allocation12], %s426
        %s428 = sand.u32 %s264, 1
        %s429 = smul.addr %s428, 32
        %s430 = scalar_lea.vmem [#allocation13], %s429
        %v431 = vld [vmem:[%s374] sm:$0xff]
        %v432 = vld [vmem:[#allocation5] sm:$0xff]
        %v433 = vld [vmem:[#allocation5 + $0x8] sm:$0xff]
        %v434 = vld [vmem:[#allocation5 + $0x10] sm:$0xff]
        %v435 = vld [vmem:[#allocation5 + $0x18] sm:$0xff]
        %v436 = vld [vmem:[%s4] sm:$0x1]
        %v438 = vlaneseq
        %v439 = vshrl.u32 %v438, 7
        %v440 = vsub.s32 0, %v439
        %v441 = vrot.slane %v436, %v440
        %vm443 = vcmask 261120
        %v445 = vsel %vm443, %v431, 0
        %447 = vmatprep.subr.mxu0 0.0
        %448 = vmatpush1.msra.mxu0 %v432
        %449 = vmatprep.subr.mxu0 0.0
        %450 = vmatpush1.msra.mxu0 %v433
        %451 = vmatprep.subr.mxu0 0.0
        %452 = vmatpush1.msra.mxu0 %v434
        %453 = vmatprep.subr.mxu0 0.0
        %454 = vmatpush1.msra.mxu0 %v435
        %455 = vmatprep.subr.mxu0 0.0
        %456 = vmatpush1.msra.mxu0 0.0
        %457 = vmatprep.subr.mxu0 0.0
        %458 = vmatpush1.msra.mxu0 0.0
        %459 = vmatprep.subr.mxu0 0.0
        %460 = vmatpush1.msra.mxu0 0.0
        %461 = vmatprep.subr.mxu0 0.0
        %462 = vmatpush1.msra.mxu0 0.0
        %463 = vmatprep.subr.mxu0 0.0
        %464 = vmatpush1.msra.mxu0 0.0
        %465 = vmatprep.subr.mxu0 0.0
        %466 = vmatpush1.msra.mxu0 0.0
        %467 = vmatprep.subr.mxu0 0.0
        %468 = vmatpush1.msra.mxu0 0.0
        %469 = vmatprep.subr.mxu0 0.0
        %470 = vmatpush1.msra.mxu0 0.0
        %471 = vmatprep.subr.mxu0 0.0
        %472 = vmatpush1.msra.mxu0 0.0
        %473 = vmatprep.subr.mxu0 0.0
        %474 = vmatpush1.msra.mxu0 0.0
        %475 = vmatprep.subr.mxu0 0.0
        %476 = vmatpush1.msra.mxu0 0.0
        %477 = vmatprep.subr.mxu0 0.0
        %478 = vmatpush1.msra.mxu0 0.0
        %479 = vmatprep.subr.mxu0 0.0
        %480 = vmatpush1.msra.mxu0 0.0
        %481 = vmatprep.subr.mxu0 0.0
        %482 = vmatpush1.msra.mxu0 0.0
        %483 = vmatprep.subr.mxu0 0.0
        %484 = vmatpush1.msra.mxu0 0.0
        %485 = vmatprep.subr.mxu0 0.0
        %486 = vmatpush1.msra.mxu0 0.0
        %487 = vmatprep.subr.mxu0 0.0
        %488 = vmatpush1.msra.mxu0 0.0
        %489 = vmatprep.subr.mxu0 0.0
        %490 = vmatpush1.msra.mxu0 0.0
        %491 = vmatprep.subr.mxu0 0.0
        %492 = vmatpush1.msra.mxu0 0.0
        %493 = vmatprep.subr.mxu0 0.0
        %494 = vmatpush1.msra.mxu0 0.0
        %495 = vmatprep.subr.mxu0 0.0
        %496 = vmatpush1.msra.mxu0 0.0
        %497 = vmatprep.subr.mxu0 0.0
        %498 = vmatpush1.msra.mxu0 0.0
        %499 = vmatprep.subr.mxu0 0.0
        %500 = vmatpush1.msra.mxu0 0.0
        %501 = vmatprep.subr.mxu0 0.0
        %502 = vmatpush1.msra.mxu0 0.0
        %503 = vmatprep.subr.mxu0 0.0
        %504 = vmatpush1.msra.mxu0 0.0
        %505 = vmatprep.subr.mxu0 0.0
        %506 = vmatpush1.msra.mxu0 0.0
        %507 = vmatprep.subr.mxu0 0.0
        %508 = vmatpush1.msra.mxu0 0.0
        %509 = vmatprep.subr.mxu0 0.0
        %510 = vmatpush1.msra.mxu0 0.0
        %511 = vmatprep.mubr.f32.mxu0 0.0
        %512 = vmatmul.mubr.f32.gmra.mrb[0].mxu0 %v445
        %v513 = vpop.f32.mrb[0].mxu0
        %v514 = vadd.f32 %v441, %v513
        %v515 = vpop.f32.mrb[0].mxu0
        %516 = vdwg.mxu0
        %v517 = vmul.f32 %v514, 0.35355338
        %v518 = vld [vmem:[#allocation7] sm:$0xff]
        %v519 = vld [vmem:[#allocation7 + $0x8] sm:$0xff]
        %v520 = vld [vmem:[#allocation7 + $0x10] sm:$0xff]
        %v521 = vld [vmem:[#allocation7 + $0x18] sm:$0xff]
        %v522 = vld [vmem:[%s5] sm:$0x1]
        %v524 = vlaneseq
        %v525 = vshrl.u32 %v524, 7
        %v526 = vsub.s32 0, %v525
        %v527 = vrot.slane %v522, %v526
        %529 = vmatprep.subr.mxu0 0.0
        %530 = vmatpush1.msra.mxu0 %v518
        %531 = vmatprep.subr.mxu0 0.0
        %532 = vmatpush1.msra.mxu0 %v519
        %533 = vmatprep.subr.mxu0 0.0
        %534 = vmatpush1.msra.mxu0 %v520
        %535 = vmatprep.subr.mxu0 0.0
        %536 = vmatpush1.msra.mxu0 %v521
        %537 = vmatprep.subr.mxu0 0.0
        %538 = vmatpush1.msra.mxu0 0.0
        %539 = vmatprep.subr.mxu0 0.0
        %540 = vmatpush1.msra.mxu0 0.0
        %541 = vmatprep.subr.mxu0 0.0
        %542 = vmatpush1.msra.mxu0 0.0
        %543 = vmatprep.subr.mxu0 0.0
        %544 = vmatpush1.msra.mxu0 0.0
        %545 = vmatprep.subr.mxu0 0.0
        %546 = vmatpush1.msra.mxu0 0.0
        %547 = vmatprep.subr.mxu0 0.0
        %548 = vmatpush1.msra.mxu0 0.0
        %549 = vmatprep.subr.mxu0 0.0
        %550 = vmatpush1.msra.mxu0 0.0
        %551 = vmatprep.subr.mxu0 0.0
        %552 = vmatpush1.msra.mxu0 0.0
        %553 = vmatprep.subr.mxu0 0.0
        %554 = vmatpush1.msra.mxu0 0.0
        %555 = vmatprep.subr.mxu0 0.0
        %556 = vmatpush1.msra.mxu0 0.0
        %557 = vmatprep.subr.mxu0 0.0
        %558 = vmatpush1.msra.mxu0 0.0
        %559 = vmatprep.subr.mxu0 0.0
        %560 = vmatpush1.msra.mxu0 0.0
        %561 = vmatprep.subr.mxu0 0.0
        %562 = vmatpush1.msra.mxu0 0.0
        %563 = vmatprep.subr.mxu0 0.0
        %564 = vmatpush1.msra.mxu0 0.0
        %565 = vmatprep.subr.mxu0 0.0
        %566 = vmatpush1.msra.mxu0 0.0
        %567 = vmatprep.subr.mxu0 0.0
        %568 = vmatpush1.msra.mxu0 0.0
        %569 = vmatprep.subr.mxu0 0.0
        %570 = vmatpush1.msra.mxu0 0.0
        %571 = vmatprep.subr.mxu0 0.0
        %572 = vmatpush1.msra.mxu0 0.0
        %573 = vmatprep.subr.mxu0 0.0
        %574 = vmatpush1.msra.mxu0 0.0
        %575 = vmatprep.subr.mxu0 0.0
        %576 = vmatpush1.msra.mxu0 0.0
        %577 = vmatprep.subr.mxu0 0.0
        %578 = vmatpush1.msra.mxu0 0.0
        %579 = vmatprep.subr.mxu0 0.0
        %580 = vmatpush1.msra.mxu0 0.0
        %581 = vmatprep.subr.mxu0 0.0
        %582 = vmatpush1.msra.mxu0 0.0
        %583 = vmatprep.subr.mxu0 0.0
        %584 = vmatpush1.msra.mxu0 0.0
        %585 = vmatprep.subr.mxu0 0.0
        %586 = vmatpush1.msra.mxu0 0.0
        %587 = vmatprep.subr.mxu0 0.0
        %588 = vmatpush1.msra.mxu0 0.0
        %589 = vmatprep.subr.mxu0 0.0
        %590 = vmatpush1.msra.mxu0 0.0
        %591 = vmatprep.subr.mxu0 0.0
        %592 = vmatpush1.msra.mxu0 0.0
        %593 = vmatprep.mubr.f32.mxu0 0.0
        %594 = vmatmul.mubr.f32.gmra.mrb[0].mxu0 %v445
        %v595 = vpop.f32.mrb[0].mxu0
        %v596 = vadd.f32 %v527, %v595
        %v597 = vpop.f32.mrb[0].mxu0
        %598 = vdwg.mxu0
        %v599 = vld [vmem:[#allocation8] sm:$0xff]
        %v600 = vld [vmem:[#allocation8 + $0x8] sm:$0xff]
        %v601 = vld [vmem:[#allocation8 + $0x10] sm:$0xff]
        %v602 = vld [vmem:[#allocation8 + $0x18] sm:$0xff]
        %v603 = vld [vmem:[%s6] sm:$0x1]
        %v605 = vlaneseq
        %v606 = vshrl.u32 %v605, 7
        %v607 = vsub.s32 0, %v606
        %v608 = vrot.slane %v603, %v607
        %610 = vmatprep.subr.mxu0 0.0
        %611 = vmatpush1.msra.mxu0 %v599
        %612 = vmatprep.subr.mxu0 0.0
        %613 = vmatpush1.msra.mxu0 %v600
        %614 = vmatprep.subr.mxu0 0.0
        %615 = vmatpush1.msra.mxu0 %v601
        %616 = vmatprep.subr.mxu0 0.0
        %617 = vmatpush1.msra.mxu0 %v602
        %618 = vmatprep.subr.mxu0 0.0
        %619 = vmatpush1.msra.mxu0 0.0
        %620 = vmatprep.subr.mxu0 0.0
        %621 = vmatpush1.msra.mxu0 0.0
        %622 = vmatprep.subr.mxu0 0.0
        %623 = vmatpush1.msra.mxu0 0.0
        %624 = vmatprep.subr.mxu0 0.0
        %625 = vmatpush1.msra.mxu0 0.0
        %626 = vmatprep.subr.mxu0 0.0
        %627 = vmatpush1.msra.mxu0 0.0
        %628 = vmatprep.subr.mxu0 0.0
        %629 = vmatpush1.msra.mxu0 0.0
        %630 = vmatprep.subr.mxu0 0.0
        %631 = vmatpush1.msra.mxu0 0.0
        %632 = vmatprep.subr.mxu0 0.0
        %633 = vmatpush1.msra.mxu0 0.0
        %634 = vmatprep.subr.mxu0 0.0
        %635 = vmatpush1.msra.mxu0 0.0
        %636 = vmatprep.subr.mxu0 0.0
        %637 = vmatpush1.msra.mxu0 0.0
        %638 = vmatprep.subr.mxu0 0.0
        %639 = vmatpush1.msra.mxu0 0.0
        %640 = vmatprep.subr.mxu0 0.0
        %641 = vmatpush1.msra.mxu0 0.0
        %642 = vmatprep.subr.mxu0 0.0
        %643 = vmatpush1.msra.mxu0 0.0
        %644 = vmatprep.subr.mxu0 0.0
        %645 = vmatpush1.msra.mxu0 0.0
        %646 = vmatprep.subr.mxu0 0.0
        %647 = vmatpush1.msra.mxu0 0.0
        %648 = vmatprep.subr.mxu0 0.0
        %649 = vmatpush1.msra.mxu0 0.0
        %650 = vmatprep.subr.mxu0 0.0
        %651 = vmatpush1.msra.mxu0 0.0
        %652 = vmatprep.subr.mxu0 0.0
        %653 = vmatpush1.msra.mxu0 0.0
        %654 = vmatprep.subr.mxu0 0.0
        %655 = vmatpush1.msra.mxu0 0.0
        %656 = vmatprep.subr.mxu0 0.0
        %657 = vmatpush1.msra.mxu0 0.0
        %658 = vmatprep.subr.mxu0 0.0
        %659 = vmatpush1.msra.mxu0 0.0
        %660 = vmatprep.subr.mxu0 0.0
        %661 = vmatpush1.msra.mxu0 0.0
        %662 = vmatprep.subr.mxu0 0.0
        %663 = vmatpush1.msra.mxu0 0.0
        %664 = vmatprep.subr.mxu0 0.0
        %665 = vmatpush1.msra.mxu0 0.0
        %666 = vmatprep.subr.mxu0 0.0
        %667 = vmatpush1.msra.mxu0 0.0
        %668 = vmatprep.subr.mxu0 0.0
        %669 = vmatpush1.msra.mxu0 0.0
        %670 = vmatprep.subr.mxu0 0.0
        %671 = vmatpush1.msra.mxu0 0.0
        %672 = vmatprep.subr.mxu0 0.0
        %673 = vmatpush1.msra.mxu0 0.0
        %674 = vmatprep.mubr.f32.mxu0 0.0
        %675 = vmatmul.mubr.f32.gmra.mrb[0].mxu0 %v445
        %v676 = vpop.f32.mrb[0].mxu0
        %v677 = vadd.f32 %v608, %v676
        %v678 = vpop.f32.mrb[0].mxu0
        %679 = vdwg.mxu0
        %vm680 = vcmask 64512
        %681 = vst.msk [vmem:[%s416] sm:$0xff] %vm680, %v517
        %682 = vst.msk [vmem:[%s423] sm:$0xff] %vm680, %v596
        %683 = vst.msk [vmem:[%s430] sm:$0xff] %vm680, %v677
        %685 = vrot.lane.b32.xlu0 %v517, 120
        %v686 = vpop.permute.xlu0 %685
        %s688 = scalar_lea.vmem %s416, 8 [#allocation10]
        %689 = vst.msk [vmem:[%s688] sm:$0xff] %vm680, %v686
        %691 = vrot.lane.b32.xlu0 %v596, 120
        %v692 = vpop.permute.xlu0 %691
        %s694 = scalar_lea.vmem %s423, 8 [#allocation11]
        %695 = vst.msk [vmem:[%s694] sm:$0xff] %vm680, %v692
        %697 = vrot.lane.b32.xlu0 %v677, 120
        %v698 = vpop.permute.xlu0 %697
        %s700 = scalar_lea.vmem %s430, 8 [#allocation13]
        %701 = vst.msk [vmem:[%s700] sm:$0xff] %vm680, %v698
        %702 = vrot.lane.b32.xlu0 %v517, 112
        %v703 = vpop.permute.xlu0 %702
        %s705 = scalar_lea.vmem %s416, 16 [#allocation10]
        %706 = vst.msk [vmem:[%s705] sm:$0xff] %vm680, %v703
        %707 = vrot.lane.b32.xlu0 %v596, 112
        %v708 = vpop.permute.xlu0 %707
        %s710 = scalar_lea.vmem %s423, 16 [#allocation11]
        %711 = vst.msk [vmem:[%s710] sm:$0xff] %vm680, %v708
        %712 = vrot.lane.b32.xlu0 %v677, 112
        %v713 = vpop.permute.xlu0 %712
        %s715 = scalar_lea.vmem %s430, 16 [#allocation13]
        %716 = vst.msk [vmem:[%s715] sm:$0xff] %vm680, %v713
        %717 = vrot.lane.b32.xlu0 %v517, 104
        %v718 = vpop.permute.xlu0 %717
        %s720 = scalar_lea.vmem %s416, 24 [#allocation10]
        %721 = vst.msk [vmem:[%s720] sm:$0xff] %vm680, %v718
        %722 = vrot.lane.b32.xlu0 %v596, 104
        %v723 = vpop.permute.xlu0 %722
        %s725 = scalar_lea.vmem %s423, 24 [#allocation11]
        %726 = vst.msk [vmem:[%s725] sm:$0xff] %vm680, %v723
        %727 = vrot.lane.b32.xlu0 %v677, 104
        %v728 = vpop.permute.xlu0 %727
        %s730 = scalar_lea.vmem %s430, 24 [#allocation13]
        %731 = vst.msk [vmem:[%s730] sm:$0xff] %vm680, %v728
        %s732 = sand.u32 %s208, 1
        %s733 = scalar_lea.sflag [#allocation4], %s732
        %s734 = sand.u32 %s208, 1
        %s735 = smul.addr %s734, 32
        %s736 = scalar_lea.vmem [#allocation10], %s735
        %s737 = sand.u32 %s32, 1
        %s738 = scalar_lea.sflag [#allocation12], %s737
        %s739 = sand.u32 %s236, 1
        %s740 = smul.addr %s739, 32
        %s741 = scalar_lea.vmem [#allocation11], %s740
        %s742 = sand.u32 %s32, 1
        %s743 = scalar_lea.sflag [#allocation12], %s742
        %s744 = sand.u32 %s264, 1
        %s745 = smul.addr %s744, 32
        %s746 = scalar_lea.vmem [#allocation13], %s745
        // Predicated region
        $region65: #{tpu_custom_call.1} parent=47 // pred_check
          %p747 = pneg %p218
        $region66: #{tpu_custom_call.1} parent=47 // pred_check_branch
          %749 = sbr.rel (%p747) target = $region68
        $region67: #{tpu_custom_call.1} parent=47 // pred_region
          %s751 = ssub.s32 512, 512
          %752 = vsyncadd %s733, %s751
          %s753 = smul.addr %s36, 4
          %s754 = sadd.s32 %s37, %s753
          %s755 = smul.addr %s754, 128
          %s756 = scalar_lea.hbm %s7, %s755
          %s757 = sshll.u32 %s736, 4
          %s758 = int_to_ptr.vmem [resolvable:$true] %s757
          %763 = dma.vmem_to_hbm [thread:$0]  %s758, 512, %s756, %s733, 128, 128, 8
        $region68: #{tpu_custom_call.1} parent=47 // pred_fallthru
          _
        // Predicated region
        $region69: #{tpu_custom_call.1} parent=47 // pred_check
          %p764 = pneg %p246
        $region70: #{tpu_custom_call.1} parent=47 // pred_check_branch
          %766 = sbr.rel (%p764) target = $region72
        $region71: #{tpu_custom_call.1} parent=47 // pred_region
          %s768 = ssub.s32 512, 512
          %769 = vsyncadd %s738, %s768
          %s770 = smul.addr %s36, 4
          %s771 = sadd.s32 %s37, %s770
          %s772 = smul.addr %s771, 128
          %s773 = scalar_lea.hbm %s8, %s772
          %s774 = sshll.u32 %s741, 4
          %s775 = int_to_ptr.vmem [resolvable:$true] %s774
          %780 = dma.vmem_to_hbm [thread:$0]  %s775, 512, %s773, %s738, 128, 128, 8
        $region72: #{tpu_custom_call.1} parent=47 // pred_fallthru
          _
        // Predicated region
        $region73: #{tpu_custom_call.1} parent=47 // pred_check
          %p781 = pneg %p274
        $region74: #{tpu_custom_call.1} parent=47 // pred_check_branch
          %783 = sbr.rel (%p781) target = $region76
        $region75: #{tpu_custom_call.1} parent=47 // pred_region
          %s785 = ssub.s32 512, 512
          %786 = vsyncadd %s743, %s785
          %s787 = smul.addr %s36, 4
          %s788 = sadd.s32 %s37, %s787
          %s789 = smul.addr %s788, 128
          %s790 = scalar_lea.hbm %s9, %s789
          %s791 = sshll.u32 %s746, 4
          %s792 = int_to_ptr.vmem [resolvable:$true] %s791
          %797 = dma.vmem_to_hbm [thread:$0]  %s792, 512, %s790, %s743, 128, 128, 8
        $region76: #{tpu_custom_call.1} parent=47 // pred_fallthru
          _
      $region48: #{tpu_custom_call.1} parent=5 // pred_fallthru
        _
      %p798 = scmp.le.s32.totalorder 2, %s27
      // Predicated region
      $region77: #{tpu_custom_call.1} parent=5 // pred_check
        %p799 = pneg %p798
      $region78: #{tpu_custom_call.1} parent=5 // pred_check_branch
        %801 = sbr.rel (%p799) target = $region80
      $region79: #{tpu_custom_call.1} parent=5 // pred_region
        %s802 = ssub.s32 %s27, 2
        // Predicated region
        $region81: #{tpu_custom_call.1} parent=79 // pred_check
          %p803 = pneg %p224
        $region82: #{tpu_custom_call.1} parent=79 // pred_check_branch
          %805 = sbr.rel (%p803) target = $region84
        $region83: #{tpu_custom_call.1} parent=79 // pred_region
          %s806 = sand.u32 %s209, 1
          %s807 = scalar_lea.sflag [#allocation4], %s806
          %s808 = sand.u32 %s209, 1
          %s809 = smul.addr %s808, 32
          %s810 = scalar_lea.vmem [#allocation10], %s809
          %811 = dma.done %s807, 512
        $region84: #{tpu_custom_call.1} parent=79 // pred_fallthru
          _
        // Predicated region
        $region85: #{tpu_custom_call.1} parent=79 // pred_check
          %p812 = pneg %p252
        $region86: #{tpu_custom_call.1} parent=79 // pred_check_branch
          %814 = sbr.rel (%p812) target = $region88
        $region87: #{tpu_custom_call.1} parent=79 // pred_region
          %s815 = sand.u32 %s33, 1
          %s816 = scalar_lea.sflag [#allocation12], %s815
          %s817 = sand.u32 %s237, 1
          %s818 = smul.addr %s817, 32
          %s819 = scalar_lea.vmem [#allocation11], %s818
          %820 = dma.done %s816, 512
        $region88: #{tpu_custom_call.1} parent=79 // pred_fallthru
          _
        // Predicated region
        $region89: #{tpu_custom_call.1} parent=79 // pred_check
          %p821 = pneg %p280
        $region90: #{tpu_custom_call.1} parent=79 // pred_check_branch
          %823 = sbr.rel (%p821) target = $region92
        $region91: #{tpu_custom_call.1} parent=79 // pred_region
          %s824 = sand.u32 %s33, 1
          %s825 = scalar_lea.sflag [#allocation12], %s824
          %s826 = sand.u32 %s265, 1
          %s827 = smul.addr %s826, 32
          %s828 = scalar_lea.vmem [#allocation13], %s827
          %829 = dma.done %s825, 512
        $region92: #{tpu_custom_call.1} parent=79 // pred_fallthru
          _
      $region80: #{tpu_custom_call.1} parent=5 // pred_fallthru
        _
    $region6: #{tpu_custom_call.1} parent=1 // loop_footer
      %s31 = sadd.s32 1, %s27
    $region7: #{tpu_custom_call.1} parent=1 // loop_footer_branch
      %26 = sbr.rel target = $region3
    $region8: #{tpu_custom_call.1} parent=1 // loop_exit
      _
    %830 = vsyncpa [#allocation3], 1
    %s831 = scalar_lea.sflag [#allocation3], 1
    %832 = vsyncpa %s831, 1
    %833 = vsyncpa [#allocation6], 1
    %834 = vsyncpa [#allocation9], 1
    %835 = vsyncpa [#allocation4], 1
    %s836 = scalar_lea.sflag [#allocation4], 1
    %837 = vsyncpa %s836, 1
    %838 = vsyncpa [#allocation12], 1
    %s839 = scalar_lea.sflag [#allocation12], 1
    %840 = vsyncpa %s839, 1

</llo_original>
